<compile_context>
chip_gen: v7x
topology: tpu7x:2x2x1
jax: 0.10.0
libtpu: 0.0.40
codegen_flags: <defaults>
</compile_context>

<pallas_src>
import jax
import jax.numpy as jnp
from jax.experimental import pallas as pl
from jax.experimental.pallas import tpu as pltpu

_VMEM_TILE_BUDGET_BYTES = 24 * 1024 * 1024   # conservative: fits v7x (64 MiB VMEM)
_MAX_TB = 256                                # per-step overhead already amortized


def _round_up(x, m):
    return -(-x // m) * m


def _pick_tb(B, S_pad, H, H2):
    """Pick the batch tile: as big as the VMEM budget allows, multiple of 8,
    and leaving >= 2 grid steps (v7x has 2 TensorCores) when B is large."""
    if B < 8:
        # Tiny batch: one full-batch step; sub-8 tiles would force masked stores.
        return B
    per_row = 4 * (2 * S_pad * H        # x block (double-buffered)
                   + S_pad * H          # possible in-kernel reshape copy of x
                   + S_pad * H2         # Linear1 activation intermediate
                   + 2 * (H + S_pad))   # packed output block (double-buffered)
    fixed = 4 * 2 * (H * H2 + 2 * H2)   # resident weights / biases
    cap = max(8, (_VMEM_TILE_BUDGET_BYTES - fixed) // per_row)
    cap = min(cap, _MAX_TB)
    tb = min(cap, max(8, B // 2))       # keep >= 2 grid steps when possible
    tb = max(8, (tb // 8) * 8)          # sublane-dense blocks
    return tb


def _make_kernel(s_valid):
    def kernel(x_ref, w1_ref, b1_ref, w2_ref, b2_ref, ow_ref):
        # x_ref:  (TB, S_pad, H)   w1_ref: (H, H2)   b1_ref: (1, H2)
        # w2_ref: (1, H2)          b2_ref: (1, 1) in SMEM
        # ow_ref: (TB, H + S_pad)  packed [ out | weights ]
        TB, S_pad, H = x_ref.shape
        H2 = w1_ref.shape[1]

        # --- Linear(H -> H2) + Tanh on the MXU --------------------------------
        # Merge (TB, S_pad) into the matmul M dimension; S_pad % 8 == 0 so the
        # merge is (8,128)-tile aligned.
        x2d = x_ref[...].reshape(TB * S_pad, H)
        h = jnp.tanh(
            jnp.dot(x2d, w1_ref[...], preferred_element_type=jnp.float32)
            + b1_ref[...]
        )                                                       # (TB*S_pad, H2)

        # --- Linear(H2 -> 1) as VPU multiply + lane reduction -----------------
        a = jnp.sum(h.reshape(TB, S_pad, H2) * w2_ref[...], axis=-1) + b2_ref[0, 0]

        # Mask padded sequence positions out of the softmax.
        if s_valid != S_pad:
            col = jax.lax.broadcasted_iota(jnp.int32, (TB, S_pad), 1)
            a = jnp.where(col < s_valid, a, -jnp.inf)

        # --- softmax over the sequence dim (per batch row) ---------------------
        m = jnp.max(a, axis=-1, keepdims=True)                  # (TB, 1)
        e = jnp.exp(a - m)                                      # (TB, S_pad)
        w = e * pl.reciprocal(jnp.sum(e, axis=-1, keepdims=True), approx=True)

        # --- weighted sum over S, then tanh ------------------------------------
        # Re-read x_ref so the (TB, S_pad, H) value is not kept live across the
        # softmax (bounds vreg live ranges / spills at large TB).
        ctx = jnp.sum(x_ref[...] * w[:, :, None], axis=1)       # (TB, H)

        ow_ref[:, :H] = jnp.tanh(ctx).astype(ow_ref.dtype)
        ow_ref[:, H:] = w.astype(ow_ref.dtype)

    return kernel


def self_attention(x, w1, b1, w2, b2, *, tb=None):
    """x: (B, S, H) f32; w1: (H, H2); b1: (1, H2); w2: (H2, 1); b2: (1, 1).
    Returns (out (B, H), weights (B, S))."""
    B, S, H = x.shape
    H2 = w1.shape[1]

    S_pad = _round_up(S, 8)
    if tb is None:
        tb = _pick_tb(B, S_pad, H, H2)
    B_pad = _round_up(B, tb)

    if S_pad != S or B_pad != B:
        x = jnp.pad(x, ((0, B_pad - B), (0, S_pad - S), (0, 0)))

    w2_row = w2.reshape(1, H2)     # (H2, 1) -> (1, H2) for the VPU reduction path
    b2_s = b2.reshape(1, 1)

    # Explicit VMEM budget so large batch tiles keep double-buffering.
    vmem_need = 4 * (tb * (2 * S_pad * H + S_pad * H + S_pad * H2 + 2 * (H + S_pad))
                     + 2 * (H * H2 + 2 * H2))
    vmem_limit = int(min(64 * 1024 * 1024, max(32 * 1024 * 1024, 2 * vmem_need)))

    slab = pl.pallas_call(
        _make_kernel(S),
        out_shape=jax.ShapeDtypeStruct((B_pad, H + S_pad), jnp.float32),
        grid_spec=pltpu.PrefetchScalarGridSpec(
            num_scalar_prefetch=0,
            grid=(B_pad // tb,),
            in_specs=[
                pl.BlockSpec((tb, S_pad, H), lambda b: (b, 0, 0)),   # x tile
                pl.BlockSpec((H, H2),        lambda b: (0, 0)),      # W1 (resident)
                pl.BlockSpec((1, H2),        lambda b: (0, 0)),      # b1
                pl.BlockSpec((1, H2),        lambda b: (0, 0)),      # W2 (as row)
                pl.BlockSpec(memory_space=pltpu.SMEM),               # b2 scalar
            ],
            out_specs=pl.BlockSpec((tb, H + S_pad), lambda b: (b, 0)),
        ),
        compiler_params=pltpu.CompilerParams(
            dimension_semantics=("parallel",),
            vmem_limit_bytes=vmem_limit,
        ),
    )(x, w1, b1, w2_row, b2_s)

    out = slab[:B, :H]
    wts = slab[:B, H:H + S]
    return out, wts


def _reference(x, w1, b1, w2, b2):
    a = jnp.tanh(x @ w1 + b1[0]) @ w2 + b2[0, 0]                # (B, S, 1)
    wts = jax.nn.softmax(a[..., 0], axis=1)                     # (B, S)
    out = jnp.tanh(jnp.sum(x * wts[..., None], axis=1))         # (B, H)
    return out, wts


if __name__ == "__main__":
    B, S, H = 2, 8, 32
    H2 = H // 2

    key = jax.random.PRNGKey(0)
    kx, k1, kb1, k2, kb2 = jax.random.split(key, 5)

    x = jax.random.normal(kx, (B, S, H), dtype=jnp.float32)
    # PyTorch Linear stores weight as (out, in); we keep (in, out) and matmul x @ W.
    w1 = jax.random.normal(k1, (H, H2), dtype=jnp.float32) * 0.1
    b1 = jax.random.normal(kb1, (1, H2), dtype=jnp.float32) * 0.1
    w2 = jax.random.normal(k2, (H2, 1), dtype=jnp.float32) * 0.1
    b2 = jax.random.normal(kb2, (1, 1), dtype=jnp.float32) * 0.1

    out, wts = self_attention(x, w1, b1, w2, b2)
    jax.block_until_ready((out, wts))

    ref_out, ref_wts = _reference(x, w1, b1, w2, b2)
    assert out.shape == (B, H) and wts.shape == (B, S)
    # Tolerance loosened (vs 1e-5) because the softmax denominator uses the
    # EUP approximate reciprocal.
    assert jnp.allclose(out, ref_out, atol=2e-3, rtol=2e-3)
    assert jnp.allclose(wts, ref_wts, atol=2e-3, rtol=2e-3)

    print("KERNEL_OK")
</pallas_src>

<mosaic_0001>
module attributes {stable_mosaic.version = 11 : i64} {
  func.func @kernel(%arg0: i32, %arg1: memref<2x8x32xf32, #tpu.memory_space<vmem>>, %arg2: memref<32x16xf32, #tpu.memory_space<vmem>>, %arg3: memref<1x16xf32, #tpu.memory_space<vmem>>, %arg4: memref<1x16xf32, #tpu.memory_space<vmem>>, %arg5: memref<1x1xf32, #tpu.memory_space<smem>>, %arg6: memref<2x40xf32, #tpu.memory_space<vmem>>) attributes {dimension_semantics = [#tpu.dimension_semantics<parallel>], iteration_bounds = array<i64: 1>, scalar_prefetch = 0 : i64, scratch_operands = 0 : i64, tpu.core_type = #tpu.core_type<tc>, window_params = [{transform_indices = @transform_0, window_bounds = array<i64: 2, 8, 32>}, {pipeline_mode = #tpu.pipeline_mode<synchronous>, transform_indices = @transform_1, window_bounds = array<i64: 32, 16>}, {pipeline_mode = #tpu.pipeline_mode<synchronous>, transform_indices = @transform_2, window_bounds = array<i64: 1, 16>}, {pipeline_mode = #tpu.pipeline_mode<synchronous>, transform_indices = @transform_3, window_bounds = array<i64: 1, 16>}, {transform_indices = @transform_4, window_bounds = array<i64: 1, 1>}, {transform_indices = @transform_5, window_bounds = array<i64: 2, 40>}]} {
    %c0 = arith.constant 0 : index
    %c0_0 = arith.constant 0 : index
    %c0_1 = arith.constant 0 : index
    %0 = vector.load %arg1[%c0, %c0_0, %c0_1] : memref<2x8x32xf32, #tpu.memory_space<vmem>>, vector<2x8x32xf32>
    %1 = vector.shape_cast %0 : vector<2x8x32xf32> to vector<16x32xf32>
    %c0_2 = arith.constant 0 : index
    %c0_3 = arith.constant 0 : index
    %2 = vector.load %arg2[%c0_2, %c0_3] : memref<32x16xf32, #tpu.memory_space<vmem>>, vector<32x16xf32>
    %cst = arith.constant dense<0.000000e+00> : vector<16x16xf32>
    %3 = tpu.matmul %1, %2, %cst {dimension_numbers = #tpu.dot_dimension_numbers<[1], [0], [0], [1], [0, 0, 1, 1], [], []>} : vector<16x32xf32>, vector<32x16xf32>, vector<16x16xf32> -> vector<16x16xf32>
    %c0_4 = arith.constant 0 : index
    %c0_5 = arith.constant 0 : index
    %4 = vector.load %arg3[%c0_4, %c0_5] : memref<1x16xf32, #tpu.memory_space<vmem>>, vector<1x16xf32>
    %5 = vector.broadcast %4 : vector<1x16xf32> to vector<16x16xf32>
    %6 = arith.addf %3, %5 : vector<16x16xf32>
    %7 = math.tanh %6 : vector<16x16xf32>
    %8 = vector.shape_cast %7 : vector<16x16xf32> to vector<2x8x16xf32>
    %c0_6 = arith.constant 0 : index
    %c0_7 = arith.constant 0 : index
    %9 = vector.load %arg4[%c0_6, %c0_7] : memref<1x16xf32, #tpu.memory_space<vmem>>, vector<1x16xf32>
    %10 = vector.shape_cast %9 : vector<1x16xf32> to vector<1x1x16xf32>
    %11 = vector.broadcast %10 : vector<1x1x16xf32> to vector<2x8x16xf32>
    %12 = arith.mulf %8, %11 : vector<2x8x16xf32>
    %cst_8 = arith.constant dense<0.000000e+00> : vector<2x8xf32>
    %13 = vector.multi_reduction <add>, %12, %cst_8 [2] : vector<2x8x16xf32> to vector<2x8xf32>
    %c0_9 = arith.constant 0 : index
    %c0_10 = arith.constant 0 : index
    %14 = memref.load %arg5[%c0_9, %c0_10] : memref<1x1xf32, #tpu.memory_space<smem>>
    %15 = vector.broadcast %14 : f32 to vector<2x8xf32>
    %16 = arith.addf %13, %15 : vector<2x8xf32>
    %cst_11 = arith.constant dense<0xFF800000> : vector<2xf32>
    %17 = vector.multi_reduction <maximumf>, %16, %cst_11 [1] : vector<2x8xf32> to vector<2xf32>
    %18 = vector.shape_cast %17 : vector<2xf32> to vector<2x1xf32>
    %19 = vector.broadcast %18 : vector<2x1xf32> to vector<2x8xf32>
    %20 = arith.subf %16, %19 : vector<2x8xf32>
    %21 = math.exp %20 : vector<2x8xf32>
    %cst_12 = arith.constant dense<0.000000e+00> : vector<2xf32>
    %22 = vector.multi_reduction <add>, %21, %cst_12 [1] : vector<2x8xf32> to vector<2xf32>
    %23 = vector.shape_cast %22 : vector<2xf32> to vector<2x1xf32>
    %24 = tpu.reciprocal %23 {approx = true} : vector<2x1xf32> -> vector<2x1xf32>
    %25 = vector.broadcast %24 : vector<2x1xf32> to vector<2x8xf32>
    %26 = arith.mulf %21, %25 : vector<2x8xf32>
    %c0_13 = arith.constant 0 : index
    %c0_14 = arith.constant 0 : index
    %c0_15 = arith.constant 0 : index
    %27 = vector.load %arg1[%c0_13, %c0_14, %c0_15] : memref<2x8x32xf32, #tpu.memory_space<vmem>>, vector<2x8x32xf32>
    %28 = vector.shape_cast %26 : vector<2x8xf32> to vector<2x8x1xf32>
    %29 = vector.broadcast %28 : vector<2x8x1xf32> to vector<2x8x32xf32>
    %30 = arith.mulf %27, %29 : vector<2x8x32xf32>
    %cst_16 = arith.constant dense<0.000000e+00> : vector<2x32xf32>
    %31 = vector.multi_reduction <add>, %30, %cst_16 [1] : vector<2x8x32xf32> to vector<2x32xf32>
    %32 = math.tanh %31 : vector<2x32xf32>
    %c0_17 = arith.constant 0 : index
    %c0_18 = arith.constant 0 : index
    %33 = vector.load %arg6[%c0_17, %c0_18] : memref<2x40xf32, #tpu.memory_space<vmem>>, vector<2x32xf32>
    tpu.vector_store %arg6[%c0_17, %c0_18], %32 {strides = array<i32>} : memref<2x40xf32, #tpu.memory_space<vmem>>, vector<2x32xf32>,
    %c0_19 = arith.constant 0 : index
    %c32 = arith.constant 32 : index
    %34 = vector.load %arg6[%c0_19, %c32] : memref<2x40xf32, #tpu.memory_space<vmem>>, vector<2x8xf32>
    tpu.vector_store %arg6[%c0_19, %c32], %26 {strides = array<i32>} : memref<2x40xf32, #tpu.memory_space<vmem>>, vector<2x8xf32>,
    return
  }
  func.func @transform_0(%arg0: i32) -> (i32, i32, i32) {
    %c0_i32 = arith.constant 0 : i32
    %c0_i32_0 = arith.constant 0 : i32
    %c0_i32_1 = arith.constant 0 : i32
    return %arg0, %c0_i32, %c0_i32_0 : i32, i32, i32
  }
  func.func @transform_1(%arg0: i32) -> (i32, i32) {
    %c0_i32 = arith.constant 0 : i32
    %c0_i32_0 = arith.constant 0 : i32
    %c0_i32_1 = arith.constant 0 : i32
    return %c0_i32, %c0_i32_0 : i32, i32
  }
  func.func @transform_2(%arg0: i32) -> (i32, i32) {
    %c0_i32 = arith.constant 0 : i32
    %c0_i32_0 = arith.constant 0 : i32
    %c0_i32_1 = arith.constant 0 : i32
    return %c0_i32, %c0_i32_0 : i32, i32
  }
  func.func @transform_3(%arg0: i32) -> (i32, i32) {
    %c0_i32 = arith.constant 0 : i32
    %c0_i32_0 = arith.constant 0 : i32
    %c0_i32_1 = arith.constant 0 : i32
    return %c0_i32, %c0_i32_0 : i32, i32
  }
  func.func @transform_4(%arg0: i32) -> (i32, i32) {
    %c0_i32 = arith.constant 0 : i32
    %c0_i32_0 = arith.constant 0 : i32
    %c0_i32_1 = arith.constant 0 : i32
    return %c0_i32, %c0_i32_0 : i32, i32
  }
  func.func @transform_5(%arg0: i32) -> (i32, i32) {
    %c0_i32 = arith.constant 0 : i32
    %c0_i32_0 = arith.constant 0 : i32
    return %arg0, %c0_i32 : i32, i32
  }
}

</mosaic_0001>

<llo_original>
// kernel: tpu_custom_call.1
$region0: #{tpu_custom_call.1}
  #allocation0 [shape = 'u32[]', space=smem, size = 0x4, offset = 0x4, fixed_abs, tag = 'smem constant byte address 0x4 - core index']
  #allocation1 [shape = 'u32[144,128]{1,0:T(1,128)}', space=vmem, size = 0x12000, scoped, tag = 'internal scratch']
  #allocation2 [shape = 'f32[1,1]{1,0:T(1,128)S(6)}', space=smem, size = 0x200, scoped, tag = 'scoped memory for tpu_custom_call.1']
  %s0 = inlined_call_operand.vmem [shape: f32[2,8,32], index: 0, kind: input, shape index: {}]
  %s1 = inlined_call_operand.vmem [shape: f32[32,16], index: 1, kind: input, shape index: {}]
  %s2 = inlined_call_operand.vmem [shape: f32[1,16], index: 2, kind: input, shape index: {}]
  %s3 = inlined_call_operand.vmem [shape: f32[1,16], index: 3, kind: input, shape index: {}]
  %s4 = inlined_call_operand.<no memory space> [shape: f32[1,1], index: 4, kind: input, shape index: {}]
  %s5 = inlined_call_operand.hbm [shape: f32[2,40], index: 5, kind: output, shape index: {}]
  %s6 = sld [smem:[#allocation0]]
  $region30: #{tpu_custom_call.1} parent=0
    _
  %s8 = ssub.s32 1, %s6
  %s9 = scalar_select 0, %s8, %s6
  %10 = sst [smem:[#allocation2]] %s4
  $region1: #{tpu_custom_call.1} parent=0
    #allocation3 [shape = 'u8[1024]{0}', space=vmem, size = 0x400, scoped, tag = 'output window, operand 0, single buffered']
    #allocation4 [shape = 's32[1]{0}', space=sflag, size = 0x4, scoped, tag = 'scoped memory for tpu_custom_call.1']
    %11 = vsyncpa [#allocation4], 0
    // Predicated region
    $region2: #{tpu_custom_call.1} parent=1 // pred_check
      _
    $region3: #{tpu_custom_call.1} parent=1 // pred_check_branch
      %13 = sbr.rel (0) target = $region5
    $region4: #{tpu_custom_call.1} parent=1 // pred_region
      _
    $region5: #{tpu_custom_call.1} parent=1 // pred_fallthru
      _
    // Predicated region
    $region6: #{tpu_custom_call.1} parent=1 // pred_check
      _
    $region7: #{tpu_custom_call.1} parent=1 // pred_check_branch
      %15 = sbr.rel (0) target = $region9
    $region8: #{tpu_custom_call.1} parent=1 // pred_region
      _
    $region9: #{tpu_custom_call.1} parent=1 // pred_fallthru
      _
    // Predicated region
    $region10: #{tpu_custom_call.1} parent=1 // pred_check
      _
    $region11: #{tpu_custom_call.1} parent=1 // pred_check_branch
      %17 = sbr.rel (0) target = $region13
    $region12: #{tpu_custom_call.1} parent=1 // pred_region
      _
    $region13: #{tpu_custom_call.1} parent=1 // pred_fallthru
      _
    // Predicated region
    $region14: #{tpu_custom_call.1} parent=1 // pred_check
      _
    $region15: #{tpu_custom_call.1} parent=1 // pred_check_branch
      %19 = sbr.rel (0) target = $region17
    $region16: #{tpu_custom_call.1} parent=1 // pred_region
      _
    $region17: #{tpu_custom_call.1} parent=1 // pred_fallthru
      _
    // Predicated region
    $region18: #{tpu_custom_call.1} parent=1 // pred_check
      _
    $region19: #{tpu_custom_call.1} parent=1 // pred_check_branch
      %21 = sbr.rel (0) target = $region21
    $region20: #{tpu_custom_call.1} parent=1 // pred_region
      _
    $region21: #{tpu_custom_call.1} parent=1 // pred_fallthru
      _
    %v22 = vld [vmem:[%s0] sm:$0xff]
    %v23 = vld [vmem:[%s0 + $0x8] sm:$0xff]
    %v24 = vld [vmem:[%s1] sm:$0xff]
    %v25 = vld [vmem:[%s1 + $0x8] sm:$0xff]
    %v26 = vld [vmem:[%s1 + $0x10] sm:$0xff]
    %v27 = vld [vmem:[%s1 + $0x18] sm:$0xff]
    %v28 = vld [vmem:[%s2] sm:$0x1]
    %v30 = vlaneseq
    %v31 = vshrl.u32 %v30, 7
    %v32 = vsub.s32 0, %v31
    %v33 = vrot.slane %v28, %v32
    %vm35 = vcmask 261120
    %v37 = vsel %vm35, %v22, 0
    %v40 = vsel %vm35, %v23, 0
    %42 = vmatprep.subr.mxu0 0.0
    %43 = vmatpush1.msra.mxu0 %v24
    %44 = vmatprep.subr.mxu0 0.0
    %45 = vmatpush1.msra.mxu0 %v25
    %46 = vmatprep.subr.mxu0 0.0
    %47 = vmatpush1.msra.mxu0 %v26
    %48 = vmatprep.subr.mxu0 0.0
    %49 = vmatpush1.msra.mxu0 %v27
    %50 = vmatprep.subr.mxu0 0.0
    %51 = vmatpush1.msra.mxu0 0.0
    %52 = vmatprep.subr.mxu0 0.0
    %53 = vmatpush1.msra.mxu0 0.0
    %54 = vmatprep.subr.mxu0 0.0
    %55 = vmatpush1.msra.mxu0 0.0
    %56 = vmatprep.subr.mxu0 0.0
    %57 = vmatpush1.msra.mxu0 0.0
    %58 = vmatprep.subr.mxu0 0.0
    %59 = vmatpush1.msra.mxu0 0.0
    %60 = vmatprep.subr.mxu0 0.0
    %61 = vmatpush1.msra.mxu0 0.0
    %62 = vmatprep.subr.mxu0 0.0
    %63 = vmatpush1.msra.mxu0 0.0
    %64 = vmatprep.subr.mxu0 0.0
    %65 = vmatpush1.msra.mxu0 0.0
    %66 = vmatprep.subr.mxu0 0.0
    %67 = vmatpush1.msra.mxu0 0.0
    %68 = vmatprep.subr.mxu0 0.0
    %69 = vmatpush1.msra.mxu0 0.0
    %70 = vmatprep.subr.mxu0 0.0
    %71 = vmatpush1.msra.mxu0 0.0
    %72 = vmatprep.subr.mxu0 0.0
    %73 = vmatpush1.msra.mxu0 0.0
    %74 = vmatprep.subr.mxu0 0.0
    %75 = vmatpush1.msra.mxu0 0.0
    %76 = vmatprep.subr.mxu0 0.0
    %77 = vmatpush1.msra.mxu0 0.0
    %78 = vmatprep.subr.mxu0 0.0
    %79 = vmatpush1.msra.mxu0 0.0
    %80 = vmatprep.subr.mxu0 0.0
    %81 = vmatpush1.msra.mxu0 0.0
    %82 = vmatprep.subr.mxu0 0.0
    %83 = vmatpush1.msra.mxu0 0.0
    %84 = vmatprep.subr.mxu0 0.0
    %85 = vmatpush1.msra.mxu0 0.0
    %86 = vmatprep.subr.mxu0 0.0
    %87 = vmatpush1.msra.mxu0 0.0
    %88 = vmatprep.subr.mxu0 0.0
    %89 = vmatpush1.msra.mxu0 0.0
    %90 = vmatprep.subr.mxu0 0.0
    %91 = vmatpush1.msra.mxu0 0.0
    %92 = vmatprep.subr.mxu0 0.0
    %93 = vmatpush1.msra.mxu0 0.0
    %94 = vmatprep.subr.mxu0 0.0
    %95 = vmatpush1.msra.mxu0 0.0
    %96 = vmatprep.subr.mxu0 0.0
    %97 = vmatpush1.msra.mxu0 0.0
    %98 = vmatprep.subr.mxu0 0.0
    %99 = vmatpush1.msra.mxu0 0.0
    %100 = vmatprep.subr.mxu0 0.0
    %101 = vmatpush1.msra.mxu0 0.0
    %102 = vmatprep.subr.mxu0 0.0
    %103 = vmatpush1.msra.mxu0 0.0
    %104 = vmatprep.subr.mxu0 0.0
    %105 = vmatpush1.msra.mxu0 0.0
    %106 = vmatprep.mubr.f32.mxu0 0.0
    %107 = vmatmul.mubr.f32.gmra.mrb[0].mxu0 %v37
    %v108 = vpop.f32.mrb[0].mxu0
    %v109 = vadd.f32 %v33, %v108
    %v110 = vpop.f32.mrb[0].mxu0
    %111 = vmatprep.mubr.f32.mxu0 0.0
    %112 = vmatmul.mubr.f32.gmra.mrb[0].mxu0 %v40
    %v113 = vpop.f32.mrb[0].mxu0
    %v114 = vadd.f32 %v33, %v113
    %v115 = vpop.f32.mrb[0].mxu0
    %116 = vdwg.mxu0
    %v117 = vtanh.pop %v109
    %v118 = vtanh.pop %v114
    %v119 = vld [vmem:[%s3] sm:$0x1]
    %v121 = vlaneseq
    %v122 = vshrl.u32 %v121, 7
    %v123 = vsub.s32 0, %v122
    %v124 = vrot.slane %v119, %v123
    %v126 = vmul.f32 %v117, %v124
    %v127 = vmul.f32 %v118, %v124
    %vm128 = vcmask 130048
    %v129 = vsel %vm128, %v126, 0.0
    %130 = vadd.xlane.f32.xlu0 %v129
    %v131 = vpop.xlane.xlu0 %130
    %v132 = vsel %vm128, %v127, 0.0
    %133 = vadd.xlane.f32.xlu0 %v132
    %v134 = vpop.xlane.xlu0 %133
    %s135 = sld [smem:[#allocation2]]
    %v136 = vstv %s135
    %v137 = vadd.f32 %v131, %v136
    %v138 = vadd.f32 %v134, %v136
    %v141 = vlaneseq
    %v142 = vand.u32 %v141, 127
    %v143 = vlaneseq
    %v144 = vshrl.u32 %v143, 7
    %v145 = vsub.s32 %v142, %v144
    %v146 = vrot.slane %v137, %v145
    %v147 = vlaneseq
    %v148 = vshrl.u32 %v147, 7
    %v149 = vsub.s32 %v142, %v148
    %v150 = vrot.slane %v138, %v149
    %vm151 = vcmask 1041409
    %v152 = vsel %vm151, %v150, %v146
    %vm154 = vcmask 58368
    %v155 = vsel %vm154, %v152, -inf
    %156 = vmax.xlane.f32.xlu0 %v155
    %v157 = vpop.xlane.xlu0 %156
    %v159 = vlaneseq
    %v160 = vshrl.u32 %v159, 7
    %v161 = vsub.s32 0, %v160
    %v162 = vrot.slane %v157, %v161
    %v163 = vlaneseq
    %v164 = vshrl.u32 %v163, 7
    %v165 = vsub.s32 1, %v164
    %v166 = vrot.slane %v157, %v165
    %v169 = vsub.f32 %v137, %v162
    %v170 = vsub.f32 %v138, %v166
    %v171 = vmul.f32 %v169, 1.442695
    %v172 = vpow.pop %v171
    %v173 = vmul.f32 %v170, 1.442695
    %v174 = vpow.pop %v173
    %177 = vset.pattern.permute.xlu0 0
    %178 = vperm.xlu0 %177, %v172
    %v179 = vpop.permute.xlu0 %178
    %180 = vset.pattern.permute.xlu0 0
    %181 = vperm.xlu0 %180, %v174
    %v182 = vpop.permute.xlu0 %181
    %v183 = vlaneseq
    %v184 = vshrl.u32 %v183, 7
    %v185 = vsub.s32 %v142, %v184
    %v186 = vrot.slane %v179, %v185
    %v187 = vlaneseq
    %v188 = vshrl.u32 %v187, 7
    %v189 = vsub.s32 %v142, %v188
    %v190 = vrot.slane %v182, %v189
    %v191 = vsel %vm151, %v190, %v186
    %v193 = vsel %vm154, %v191, 0.0
    %194 = vadd.xlane.f32.xlu0 %v193
    %v195 = vpop.xlane.xlu0 %194
    %v196 = vrcp.pop %v195
    %v198 = vlaneseq
    %v199 = vshrl.u32 %v198, 7
    %v200 = vsub.s32 0, %v199
    %v201 = vrot.slane %v196, %v200
    %v202 = vlaneseq
    %v203 = vshrl.u32 %v202, 7
    %v204 = vsub.s32 1, %v203
    %v205 = vrot.slane %v196, %v204
    %v208 = vmul.f32 %v172, %v201
    %v209 = vmul.f32 %v174, %v205
    %211 = vset.pattern.permute.xlu0 0
    %212 = vperm.xlu0 %211, %v208
    %v213 = vpop.permute.xlu0 %212
    %216 = vset.pattern.permute.xlu0 0
    %217 = vperm.xlu0 %216, %v209
    %v218 = vpop.permute.xlu0 %217
    %v220 = vmul.f32 %v22, %v213
    %v221 = vmul.f32 %v23, %v218
    %v222 = vsel %vm35, %v220, 0.0
    %v223 = vrot.slane %v222, 4
    %v224 = vadd.f32 %v222, %v223
    %v225 = vrot.slane %v224, 2
    %v226 = vadd.f32 %v224, %v225
    %v227 = vrot.slane %v226, 1
    %v228 = vadd.f32 %v226, %v227
    %v229 = vsel %vm35, %v221, 0.0
    %v230 = vrot.slane %v229, 4
    %v231 = vadd.f32 %v229, %v230
    %v232 = vrot.slane %v231, 2
    %v233 = vadd.f32 %v231, %v232
    %v234 = vrot.slane %v233, 1
    %v235 = vadd.f32 %v233, %v234
    %v236 = vtanh.pop %v228
    %v237 = vtanh.pop %v235
    %v240 = vsel %vm151, %v237, %v236
    %vm242 = vcmask 254976
    %243 = vst.msk [vmem:[#allocation3] sm:$0x3] %vm242, %v240
    %v244 = vadd.s32 %v142, 4294967264
    %v245 = vlaneseq
    %v246 = vshrl.u32 %v245, 7
    %v247 = vsub.s32 %v244, %v246
    %v248 = vrot.slane %v213, %v247
    %v249 = vlaneseq
    %v250 = vshrl.u32 %v249, 7
    %v251 = vsub.s32 %v244, %v250
    %v252 = vrot.slane %v218, %v251
    %v253 = vsel %vm151, %v252, %v248
    %vm255 = vcmask 320768
    %256 = vst.msk [vmem:[#allocation3] sm:$0x3] %vm255, %v253
    // Predicated region
    $region22: #{tpu_custom_call.1} parent=1 // pred_check
      _
    $region23: #{tpu_custom_call.1} parent=1 // pred_check_branch
      %258 = sbr.rel (0) target = $region25
    $region24: #{tpu_custom_call.1} parent=1 // pred_region
      %s260 = ssub.s32 32, 32
      %261 = vsyncadd [#allocation4], %s260
      %s263 = sshll.u32 [#allocation3], 4
      %s264 = int_to_ptr.vmem [resolvable:$true] %s263
      %266 = dma.vmem_to_hbm [thread:$0]  %s264, 32, %s5, [#allocation4]
    $region25: #{tpu_custom_call.1} parent=1 // pred_fallthru
      _
    // Predicated region
    $region26: #{tpu_custom_call.1} parent=1 // pred_check
      _
    $region27: #{tpu_custom_call.1} parent=1 // pred_check_branch
      %268 = sbr.rel (0) target = $region29
    $region28: #{tpu_custom_call.1} parent=1 // pred_region
      %269 = dma.done [#allocation4], 32
    $region29: #{tpu_custom_call.1} parent=1 // pred_fallthru
      _
    %270 = vsyncpa [#allocation4], 1

</llo_original>
